<compile_context>
chip_gen: v7x
topology: tpu7x:2x2x1
jax: 0.10.0
libtpu: 0.0.40
codegen_flags: <defaults>
</compile_context>

<pallas_src>
import jax
import jax.numpy as jnp
from jax.experimental import pallas as pl
from jax.experimental.pallas import tpu as pltpu


def _round_up(x, m):
    return ((x + m - 1) // m) * m


def _choose_tn(n_pad):
    # Prefer >= 2 lane-dense column tiles (so v7x's 2 TensorCores both get
    # work) with a tile size that exactly divides the padded feature dim
    # (no per-call weight pad). Covers BERT sizes: 768 -> 384, 1024 -> 512.
    for cand in (512, 384, 256, 128):
        if n_pad % cand == 0 and n_pad // cand >= 2:
            return cand
    return n_pad if n_pad <= 512 else 128


def bert_pooler_kernel(x_ref, w_ref, b_ref, o_ref):
    # x_ref: (tm, K)  seq-index-1 activations (dense 2-D slab)
    # w_ref: (K, tn)  weight, pre-transposed to MXU-native (in, out) layout
    # b_ref: (1, tn)  bias
    y = jnp.dot(x_ref[...], w_ref[...], preferred_element_type=jnp.float32)
    y = y + b_ref[...].astype(jnp.float32)          # f32 epilogue (v5e-safe)
    o_ref[...] = jnp.tanh(y).astype(o_ref.dtype)


def prepare_bert_pooler_params(weight, bias, *, weight_dtype=None):
    """One-time parameter prep. Cache the result; do NOT call per forward.

    weight: torch nn.Linear layout (out_features, in_features)
    Returns (w_t, bias2d, out_features): w_t is (in, out_padded), optionally
    cast to weight_dtype (e.g. jnp.bfloat16 halves weight HBM traffic).
    """
    n_out, _ = weight.shape
    w_t = jnp.asarray(weight).T                      # (K, N), transposed ONCE
    if weight_dtype is not None:
        w_t = w_t.astype(weight_dtype)               # cast lives with params
    b2 = jnp.asarray(bias, dtype=jnp.float32).reshape(1, -1)
    n_pad = _round_up(n_out, 128)
    if n_pad != n_out:                               # one-time pad, not per call
        w_t = jnp.pad(w_t, ((0, 0), (0, n_pad - n_out)))
        b2 = jnp.pad(b2, ((0, 0), (0, n_pad - n_out)))
    return w_t, b2, n_out


def make_bert_pooler(weight, bias, *, weight_dtype=None):
    """Build a jitted BertPooler forward: tanh(hidden_states[:, 1] @ W.T + b)."""
    w_t, b2, n_out = prepare_bert_pooler_params(weight, bias, weight_dtype=weight_dtype)
    k_dim, n_pad = w_t.shape

    @jax.jit
    def pooler(hidden_states):
        B, S, H = hidden_states.shape
        assert S >= 2 and H == k_dim
        out_dtype = hidden_states.dtype

        # Seq-index-1 selection (matches the reference module, which pools
        # index 1, not the usual [CLS]=0) + optional cast + pad stay under
        # this jit so they fuse with the kernel's input staging.
        x = hidden_states[:, 1, :]                    # (B, K) dense slab
        if weight_dtype is not None:
            x = x.astype(weight_dtype)

        # Batch tiling: one tile up to 512 rows; above that split evenly
        # (avoids the 129 -> 256 double-padding pathology).
        ni = pl.cdiv(B, 512)
        tm = _round_up(pl.cdiv(B, ni), 8)
        b_pad = tm * ni
        if b_pad != B:
            x = jnp.pad(x, ((0, b_pad - B), (0, 0)))

        tn = _choose_tn(n_pad)
        nj = n_pad // tn

        # Grid order (j outer, i inner): weight block index is constant across
        # consecutive i steps -> each (K, tn) weight tile is DMA'd exactly once.
        grid = (nj, ni)

        isz = lambda a: jnp.dtype(a.dtype).itemsize
        cost = pl.CostEstimate(
            flops=2 * b_pad * k_dim * n_pad,
            transcendentals=b_pad * n_pad,
            bytes_accessed=(k_dim * n_pad * isz(w_t)           # weight streamed once
                            + nj * b_pad * k_dim * isz(x)      # x re-read per column tile
                            + n_pad * isz(b2)
                            + b_pad * n_pad * jnp.dtype(out_dtype).itemsize),
        )

        # Double-buffered tile budget (+ headroom), explicit so big-tile
        # configs don't trip the scoped defaults (16 MiB v5e / 32 MiB v7x).
        vmem_need = 2 * (tm * k_dim * isz(x)
                         + k_dim * tn * isz(w_t)
                         + 8 * tn * isz(b2)
                         + tm * tn * jnp.dtype(out_dtype).itemsize)
        vmem_limit = int(min(max(2 * vmem_need, 8 << 20), 64 << 20))

        out_padded = pl.pallas_call(
            bert_pooler_kernel,
            out_shape=jax.ShapeDtypeStruct((b_pad, n_pad), out_dtype),
            grid_spec=pltpu.PrefetchScalarGridSpec(
                num_scalar_prefetch=0,
                grid=grid,
                in_specs=[
                    pl.BlockSpec((tm, k_dim), lambda j, i: (i, 0)),  # activations
                    pl.BlockSpec((k_dim, tn), lambda j, i: (0, j)),  # weight (in,out)
                    pl.BlockSpec((1, tn), lambda j, i: (0, j)),      # bias
                ],
                out_specs=pl.BlockSpec((tm, tn), lambda j, i: (i, j)),
            ),
            compiler_params=pltpu.CompilerParams(
                dimension_semantics=("parallel", "parallel"),
                vmem_limit_bytes=vmem_limit,
            ),
            cost_estimate=cost,
        )(x, w_t, b2)

        return out_padded[:B, :n_out]

    return pooler


if __name__ == "__main__":
    # Small shapes consistent with the module: batch=2, seq=8, hidden=32.
    B, S, H = 2, 8, 32
    key = jax.random.PRNGKey(0)
    k_hs, k_w, k_b = jax.random.split(key, 3)

    hidden_states = jax.random.normal(k_hs, (B, S, H), dtype=jnp.float32)
    # Deterministic synthetic parameters (torch nn.Linear layout: (out, in)).
    weight = jax.random.normal(k_w, (H, H), dtype=jnp.float32) * 0.02
    bias = jax.random.normal(k_b, (H,), dtype=jnp.float32) * 0.02

    # f32 path: params prepared (transposed/padded) exactly once here.
    pooler = make_bert_pooler(weight, bias)
    out = jax.block_until_ready(pooler(hidden_states))

    # Reference (same math as the PyTorch forward: hidden_states[:, 1]).
    ref = jnp.tanh(hidden_states[:, 1] @ weight.T + bias)
    assert out.shape == (B, H)
    assert jnp.allclose(out, ref, atol=1e-5, rtol=1e-5)

    # bf16-weight path (cast once at prep time; f32 accumulation + epilogue).
    pooler_bf16 = make_bert_pooler(weight, bias, weight_dtype=jnp.bfloat16)
    out_bf16 = jax.block_until_ready(pooler_bf16(hidden_states))
    assert jnp.allclose(out_bf16, ref, atol=2e-2, rtol=2e-2)

    print("KERNEL_OK")
</pallas_src>

<mosaic_0001>
module attributes {stable_mosaic.version = 11 : i64} {
  func.func @bert_pooler_kernel(%arg0: i32, %arg1: i32, %arg2: memref<8x32xf32, #tpu.memory_space<vmem>>, %arg3: memref<32x128xf32, #tpu.memory_space<vmem>>, %arg4: memref<1x128xf32, #tpu.memory_space<vmem>>, %arg5: memref<8x128xf32, #tpu.memory_space<vmem>>) attributes {dimension_semantics = [#tpu.dimension_semantics<parallel>, #tpu.dimension_semantics<parallel>], iteration_bounds = array<i64: 1, 1>, scalar_prefetch = 0 : i64, scratch_operands = 0 : i64, tpu.core_type = #tpu.core_type<tc>, window_params = [{transform_indices = @transform_0, window_bounds = array<i64: 8, 32>}, {transform_indices = @transform_1, window_bounds = array<i64: 32, 128>}, {transform_indices = @transform_2, window_bounds = array<i64: 1, 128>}, {transform_indices = @transform_3, window_bounds = array<i64: 8, 128>}]} {
    %c0 = arith.constant 0 : index
    %c0_0 = arith.constant 0 : index
    %0 = vector.load %arg2[%c0, %c0_0] : memref<8x32xf32, #tpu.memory_space<vmem>>, vector<8x32xf32>
    %c0_1 = arith.constant 0 : index
    %c0_2 = arith.constant 0 : index
    %1 = vector.load %arg3[%c0_1, %c0_2] : memref<32x128xf32, #tpu.memory_space<vmem>>, vector<32x128xf32>
    %cst = arith.constant dense<0.000000e+00> : vector<8x128xf32>
    %2 = tpu.matmul %0, %1, %cst {dimension_numbers = #tpu.dot_dimension_numbers<[1], [0], [0], [1], [0, 0, 1, 1], [], []>} : vector<8x32xf32>, vector<32x128xf32>, vector<8x128xf32> -> vector<8x128xf32>
    %c0_3 = arith.constant 0 : index
    %c0_4 = arith.constant 0 : index
    %3 = vector.load %arg4[%c0_3, %c0_4] : memref<1x128xf32, #tpu.memory_space<vmem>>, vector<1x128xf32>
    %4 = vector.broadcast %3 : vector<1x128xf32> to vector<8x128xf32>
    %5 = arith.addf %2, %4 : vector<8x128xf32>
    %6 = math.tanh %5 : vector<8x128xf32>
    %c0_5 = arith.constant 0 : index
    %c0_6 = arith.constant 0 : index
    %7 = vector.load %arg5[%c0_5, %c0_6] : memref<8x128xf32, #tpu.memory_space<vmem>>, vector<8x128xf32>
    tpu.vector_store %arg5[%c0_5, %c0_6], %6 {strides = array<i32>} : memref<8x128xf32, #tpu.memory_space<vmem>>, vector<8x128xf32>,
    return
  }
  func.func @transform_0(%arg0: i32, %arg1: i32) -> (i32, i32) {
    %c0_i32 = arith.constant 0 : i32
    %c0_i32_0 = arith.constant 0 : i32
    return %arg1, %c0_i32 : i32, i32
  }
  func.func @transform_1(%arg0: i32, %arg1: i32) -> (i32, i32) {
    %c0_i32 = arith.constant 0 : i32
    %c0_i32_0 = arith.constant 0 : i32
    return %c0_i32, %arg0 : i32, i32
  }
  func.func @transform_2(%arg0: i32, %arg1: i32) -> (i32, i32) {
    %c0_i32 = arith.constant 0 : i32
    %c0_i32_0 = arith.constant 0 : i32
    return %c0_i32, %arg0 : i32, i32
  }
  func.func @transform_3(%arg0: i32, %arg1: i32) -> (i32, i32) {
    %c0_i32 = arith.constant 0 : i32
    return %arg1, %arg0 : i32, i32
  }
}

</mosaic_0001>

<llo_original>
// kernel: pooler.1
$region0: #{pooler.1}
  #allocation0 [shape = 'u32[]', space=smem, size = 0x4, offset = 0x4, fixed_abs, tag = 'smem constant byte address 0x4 - core index']
  #allocation1 [shape = 'u32[144,128]{1,0:T(1,128)}', space=vmem, size = 0x12000, scoped, tag = 'internal scratch']
  %s0 = inlined_call_operand.vmem [shape: f32[8,32], index: 0, kind: input, shape index: {}]
  %s1 = inlined_call_operand.hbm [shape: f32[32,128], index: 1, kind: input, shape index: {}]
  %s2 = inlined_call_operand.vmem [shape: f32[1,128], index: 2, kind: input, shape index: {}]
  %s3 = inlined_call_operand.vmem [shape: f32[8,128], index: 3, kind: output, shape index: {}]
  %s4 = sld [smem:[#allocation0]]
  $region26: #{pooler.1} parent=0
    _
  %s6 = ssub.s32 1, %s4
  %s7 = scalar_select 0, %s6, %s4
  $region1: #{pooler.1} parent=0
    #allocation2 [shape = 'u8[16384]{0}', space=vmem, size = 0x4000, scoped, tag = 'input window, operand 1, single buffered']
    #allocation3 [shape = 's32[1]{0}', space=sflag, size = 0x4, scoped, tag = 'scoped memory for pooler.1']
    %8 = vsyncpa [#allocation3], 0
    // Predicated region
    $region2: #{pooler.1} parent=1 // pred_check
      _
    $region3: #{pooler.1} parent=1 // pred_check_branch
      %10 = sbr.rel (0) target = $region5
    $region4: #{pooler.1} parent=1 // pred_region
      _
    $region5: #{pooler.1} parent=1 // pred_fallthru
      _
    // Predicated region
    $region6: #{pooler.1} parent=1 // pred_check
      _
    $region7: #{pooler.1} parent=1 // pred_check_branch
      %12 = sbr.rel (0) target = $region9
    $region8: #{pooler.1} parent=1 // pred_region
      %s14 = ssub.s32 512, 512
      %15 = vsyncadd [#allocation3], %s14
      %s16 = sshll.u32 [#allocation2], 4
      %s17 = int_to_ptr.vmem [resolvable:$true] %s16
      %22 = dma.hbm_to_vmem [thread:$0]  %s1, 512, %s17, [#allocation3], 128, 128, 8
    $region9: #{pooler.1} parent=1 // pred_fallthru
      _
    // Predicated region
    $region10: #{pooler.1} parent=1 // pred_check
      _
    $region11: #{pooler.1} parent=1 // pred_check_branch
      %24 = sbr.rel (0) target = $region13
    $region12: #{pooler.1} parent=1 // pred_region
      _
    $region13: #{pooler.1} parent=1 // pred_fallthru
      _
    // Predicated region
    $region14: #{pooler.1} parent=1 // pred_check
      _
    $region15: #{pooler.1} parent=1 // pred_check_branch
      %26 = sbr.rel (0) target = $region17
    $region16: #{pooler.1} parent=1 // pred_region
      %27 = dma.done [#allocation3], 512
    $region17: #{pooler.1} parent=1 // pred_fallthru
      _
    %v28 = vld [vmem:[%s0] sm:$0xff]
    %v29 = vld [vmem:[#allocation2] sm:$0xff]
    %v30 = vld [vmem:[#allocation2 + $0x8] sm:$0xff]
    %v31 = vld [vmem:[#allocation2 + $0x10] sm:$0xff]
    %v32 = vld [vmem:[#allocation2 + $0x18] sm:$0xff]
    %v33 = vld [vmem:[%s2] sm:$0x1]
    %v35 = vlaneseq
    %v36 = vshrl.u32 %v35, 7
    %v37 = vsub.s32 0, %v36
    %v38 = vrot.slane %v33, %v37
    %vm40 = vcmask 261120
    %v42 = vsel %vm40, %v28, 0
    %44 = vmatprep.subr.mxu0 0.0
    %45 = vmatpush1.msra.mxu0 %v29
    %46 = vmatprep.subr.mxu0 0.0
    %47 = vmatpush1.msra.mxu0 %v30
    %48 = vmatprep.subr.mxu0 0.0
    %49 = vmatpush1.msra.mxu0 %v31
    %50 = vmatprep.subr.mxu0 0.0
    %51 = vmatpush1.msra.mxu0 %v32
    %52 = vmatprep.subr.mxu0 0.0
    %53 = vmatpush1.msra.mxu0 0.0
    %54 = vmatprep.subr.mxu0 0.0
    %55 = vmatpush1.msra.mxu0 0.0
    %56 = vmatprep.subr.mxu0 0.0
    %57 = vmatpush1.msra.mxu0 0.0
    %58 = vmatprep.subr.mxu0 0.0
    %59 = vmatpush1.msra.mxu0 0.0
    %60 = vmatprep.subr.mxu0 0.0
    %61 = vmatpush1.msra.mxu0 0.0
    %62 = vmatprep.subr.mxu0 0.0
    %63 = vmatpush1.msra.mxu0 0.0
    %64 = vmatprep.subr.mxu0 0.0
    %65 = vmatpush1.msra.mxu0 0.0
    %66 = vmatprep.subr.mxu0 0.0
    %67 = vmatpush1.msra.mxu0 0.0
    %68 = vmatprep.subr.mxu0 0.0
    %69 = vmatpush1.msra.mxu0 0.0
    %70 = vmatprep.subr.mxu0 0.0
    %71 = vmatpush1.msra.mxu0 0.0
    %72 = vmatprep.subr.mxu0 0.0
    %73 = vmatpush1.msra.mxu0 0.0
    %74 = vmatprep.subr.mxu0 0.0
    %75 = vmatpush1.msra.mxu0 0.0
    %76 = vmatprep.subr.mxu0 0.0
    %77 = vmatpush1.msra.mxu0 0.0
    %78 = vmatprep.subr.mxu0 0.0
    %79 = vmatpush1.msra.mxu0 0.0
    %80 = vmatprep.subr.mxu0 0.0
    %81 = vmatpush1.msra.mxu0 0.0
    %82 = vmatprep.subr.mxu0 0.0
    %83 = vmatpush1.msra.mxu0 0.0
    %84 = vmatprep.subr.mxu0 0.0
    %85 = vmatpush1.msra.mxu0 0.0
    %86 = vmatprep.subr.mxu0 0.0
    %87 = vmatpush1.msra.mxu0 0.0
    %88 = vmatprep.subr.mxu0 0.0
    %89 = vmatpush1.msra.mxu0 0.0
    %90 = vmatprep.subr.mxu0 0.0
    %91 = vmatpush1.msra.mxu0 0.0
    %92 = vmatprep.subr.mxu0 0.0
    %93 = vmatpush1.msra.mxu0 0.0
    %94 = vmatprep.subr.mxu0 0.0
    %95 = vmatpush1.msra.mxu0 0.0
    %96 = vmatprep.subr.mxu0 0.0
    %97 = vmatpush1.msra.mxu0 0.0
    %98 = vmatprep.subr.mxu0 0.0
    %99 = vmatpush1.msra.mxu0 0.0
    %100 = vmatprep.subr.mxu0 0.0
    %101 = vmatpush1.msra.mxu0 0.0
    %102 = vmatprep.subr.mxu0 0.0
    %103 = vmatpush1.msra.mxu0 0.0
    %104 = vmatprep.subr.mxu0 0.0
    %105 = vmatpush1.msra.mxu0 0.0
    %106 = vmatprep.subr.mxu0 0.0
    %107 = vmatpush1.msra.mxu0 0.0
    %108 = vmatprep.mubr.f32.mxu0 0.0
    %109 = vmatmul.mubr.f32.gmra.mrb[0].mxu0 %v42
    %v110 = vpop.f32.mrb[0].mxu0
    %v111 = vadd.f32 %v38, %v110
    %v112 = vpop.f32.mrb[0].mxu0
    %113 = vdwg.mxu0
    %v114 = vtanh.pop %v111
    %115 = vst [vmem:[%s3] sm:$0xff] %v114
    // Predicated region
    $region18: #{pooler.1} parent=1 // pred_check
      _
    $region19: #{pooler.1} parent=1 // pred_check_branch
      %117 = sbr.rel (0) target = $region21
    $region20: #{pooler.1} parent=1 // pred_region
      _
    $region21: #{pooler.1} parent=1 // pred_fallthru
      _
    // Predicated region
    $region22: #{pooler.1} parent=1 // pred_check
      _
    $region23: #{pooler.1} parent=1 // pred_check_branch
      %119 = sbr.rel (0) target = $region25
    $region24: #{pooler.1} parent=1 // pred_region
      _
    $region25: #{pooler.1} parent=1 // pred_fallthru
      _
    %120 = vsyncpa [#allocation3], 1

</llo_original>
